<compile_context>
chip_gen: v6e
topology: v6e:2x2x1
jax: 0.10.0
libtpu: 0.0.40
codegen_flags: <defaults>
</compile_context>

<pallas_src>
import functools

import jax
import jax.numpy as jnp
from jax.experimental import pallas as pl
from jax.experimental.pallas import tpu as pltpu


def _round_up(v, m):
    return (v + m - 1) // m * m


# ----------------------------- Pallas kernel ------------------------------- #
def _skip_attn_kernel(g_ref, x_ref, wgT_ref, wxT_ref, b_ref, wpsi_ref,
                      bpsi_ref, o_ref):
    # g_ref:    (F_g, TP)    pixel tile of gating signal (pixels on lanes)
    # x_ref:    (F_l, TP)    pixel tile of skip features
    # wgT_ref:  (F_int, F_g) folded conv+BN weight for W_g (transposed)
    # wxT_ref:  (F_int, F_l) folded conv+BN weight for W_x (transposed)
    # b_ref:    (F_int, 1)   folded combined bias (bg + bx)
    # wpsi_ref: (1, F_int)   folded psi weight (row vector)
    # bpsi_ref: (1,)         folded psi bias, SMEM scalar
    # o_ref:    (F_l, TP)
    g = g_ref[...]
    x = x_ref[...]

    g1 = jnp.dot(wgT_ref[...], g, preferred_element_type=jnp.float32)
    x1 = jnp.dot(wxT_ref[...], x, preferred_element_type=jnp.float32)
    a = jnp.maximum(g1 + x1 + b_ref[...], 0.0)            # ReLU, (F_int, TP)

    # psi 1x1 conv to one channel as an MXU matmul -> (1, TP), already in the
    # right layout for the broadcast gating multiply.
    s = jnp.dot(wpsi_ref[...], a, preferred_element_type=jnp.float32)
    s = jax.nn.sigmoid(s + bpsi_ref[0])                   # (1, TP)

    o_ref[...] = (x.astype(jnp.float32) * s).astype(o_ref.dtype)


def skip_attention_pallas(g_ncp, x_ncp, wgT, wxT, b, wpsi, bpsi, *, tp=512):
    """g_ncp: (N, F_g, P), x_ncp: (N, F_l, P). Returns (N, F_l, P)."""
    N, F_g, P = g_ncp.shape
    _, F_l, _ = x_ncp.shape
    F_int = wgT.shape[0]

    # Pixel tile: multiple of 128, clamped to the (128-rounded) pixel count.
    tp_eff = _round_up(min(tp, _round_up(P, 128)), 128)
    P_pad = _round_up(P, tp_eff)
    if P_pad != P:
        pad = ((0, 0), (0, 0), (0, P_pad - P))
        g_ncp = jnp.pad(g_ncp, pad)
        x_ncp = jnp.pad(x_ncp, pad)

    grid = (N, P_pad // tp_eff)
    w_map = lambda n, i: (0, 0)   # weights: one block, resident for all steps

    out = pl.pallas_call(
        _skip_attn_kernel,
        out_shape=jax.ShapeDtypeStruct((N, F_l, P_pad), x_ncp.dtype),
        grid_spec=pltpu.PrefetchScalarGridSpec(
            num_scalar_prefetch=0,
            grid=grid,
            in_specs=[
                pl.BlockSpec((None, F_g, tp_eff), lambda n, i: (n, 0, i)),  # g
                pl.BlockSpec((None, F_l, tp_eff), lambda n, i: (n, 0, i)),  # x
                pl.BlockSpec((F_int, F_g), w_map),                          # Wg^T
                pl.BlockSpec((F_int, F_l), w_map),                          # Wx^T
                pl.BlockSpec((F_int, 1), w_map),                            # b
                pl.BlockSpec((1, F_int), w_map),                            # wpsi
                pl.BlockSpec(memory_space=pltpu.MemorySpace.SMEM),          # bpsi
            ],
            out_specs=pl.BlockSpec((None, F_l, tp_eff), lambda n, i: (n, 0, i)),
        ),
        compiler_params=pltpu.CompilerParams(
            dimension_semantics=("parallel", "parallel")),
    )(g_ncp, x_ncp, wgT, wxT, b, wpsi, bpsi)

    if P_pad != P:
        out = out[:, :, :P]
    return out


# ------------------------- parameter setup / glue --------------------------- #
def _fold_conv_bn(w, b, gamma, beta, mean, var, eps=1e-5):
    """Fold eval-mode BatchNorm into a 1x1 conv. w: (Cin, Cout), b: (Cout,)."""
    scale = gamma / jnp.sqrt(var + eps)
    w_f = w * scale[None, :]
    b_f = (b - mean) * scale + beta
    return w_f, b_f


def init_params(key, F_g, F_l, F_int):
    ks = jax.random.split(key, 12)
    p = {}
    # W_g: Conv2d(F_g -> F_int, 1x1) + BN(F_int)
    p["wg"] = jax.random.normal(ks[0], (F_g, F_int), jnp.float32) * 0.1
    p["bg"] = jax.random.normal(ks[1], (F_int,), jnp.float32) * 0.1
    p["g_gamma"] = 1.0 + 0.1 * jax.random.normal(ks[2], (F_int,), jnp.float32)
    p["g_beta"] = 0.1 * jax.random.normal(ks[3], (F_int,), jnp.float32)
    p["g_mean"] = 0.1 * jax.random.normal(ks[4], (F_int,), jnp.float32)
    p["g_var"] = jnp.abs(jax.random.normal(ks[5], (F_int,), jnp.float32)) + 0.5
    # W_x: Conv2d(F_l -> F_int, 1x1) + BN(F_int)
    p["wx"] = jax.random.normal(ks[6], (F_l, F_int), jnp.float32) * 0.1
    p["bx"] = jax.random.normal(ks[7], (F_int,), jnp.float32) * 0.1
    p["x_gamma"] = 1.0 + 0.1 * jax.random.normal(ks[8], (F_int,), jnp.float32)
    p["x_beta"] = 0.1 * jax.random.normal(ks[9], (F_int,), jnp.float32)
    p["x_mean"] = 0.1 * jax.random.normal(ks[10], (F_int,), jnp.float32)
    p["x_var"] = jnp.abs(jax.random.normal(ks[11], (F_int,), jnp.float32)) + 0.5
    # psi: Conv2d(F_int -> 1, 1x1) + BN(1) + Sigmoid
    kp = jax.random.split(ks[0], 6)
    p["wpsi"] = jax.random.normal(kp[0], (F_int,), jnp.float32) * 0.1
    p["bpsi"] = 0.1 * jax.random.normal(kp[1], (), jnp.float32)
    p["p_gamma"] = 1.0 + 0.1 * jax.random.normal(kp[2], (), jnp.float32)
    p["p_beta"] = 0.1 * jax.random.normal(kp[3], (), jnp.float32)
    p["p_mean"] = 0.1 * jax.random.normal(kp[4], (), jnp.float32)
    p["p_var"] = jnp.abs(jax.random.normal(kp[5], ())) + 0.5
    return p


def skip_attention_block(g_nchw, x_nchw, params, *, tp=512):
    """Forward pass matching SkipAttentionBlock.forward (BN in eval mode)."""
    N, F_g, H, W = g_nchw.shape
    _, F_l, _, _ = x_nchw.shape
    P = H * W

    # NCHW -> (N, C, H*W): merges trailing dims, no HBM transpose.
    g_r = g_nchw.reshape(N, F_g, P)
    x_r = x_nchw.reshape(N, F_l, P)

    wg_f, bg_f = _fold_conv_bn(params["wg"], params["bg"], params["g_gamma"],
                               params["g_beta"], params["g_mean"], params["g_var"])
    wx_f, bx_f = _fold_conv_bn(params["wx"], params["bx"], params["x_gamma"],
                               params["x_beta"], params["x_mean"], params["x_var"])
    psi_scale = params["p_gamma"] / jnp.sqrt(params["p_var"] + 1e-5)
    wpsi_f = params["wpsi"] * psi_scale                       # (F_int,)
    bpsi_f = (params["bpsi"] - params["p_mean"]) * psi_scale + params["p_beta"]

    out = skip_attention_pallas(
        g_r, x_r,
        jnp.transpose(wg_f),                  # (F_int, F_g)
        jnp.transpose(wx_f),                  # (F_int, F_l)
        (bg_f + bx_f)[:, None],               # single folded bias (F_int, 1)
        wpsi_f[None, :],                      # (1, F_int)
        bpsi_f.reshape(1).astype(jnp.float32),  # SMEM scalar
        tp=tp,
    )

    return out.reshape(N, F_l, H, W)


def _reference(g_nchw, x_nchw, params):
    """Pure-JAX reference of the PyTorch forward (eval-mode BN)."""
    def conv_bn(z, w, b, gamma, beta, mean, var):
        y = jnp.einsum("nchw,co->nohw", z, w) + b[None, :, None, None]
        return ((y - mean[None, :, None, None])
                * (gamma / jnp.sqrt(var + 1e-5))[None, :, None, None]
                + beta[None, :, None, None])

    g1 = conv_bn(g_nchw, params["wg"], params["bg"], params["g_gamma"],
                 params["g_beta"], params["g_mean"], params["g_var"])
    x1 = conv_bn(x_nchw, params["wx"], params["bx"], params["x_gamma"],
                 params["x_beta"], params["x_mean"], params["x_var"])
    a = jnp.maximum(g1 + x1, 0.0)
    psi = jnp.einsum("nchw,c->nhw", a, params["wpsi"])[:, None] + params["bpsi"]
    psi = ((psi - params["p_mean"]) * (params["p_gamma"] / jnp.sqrt(params["p_var"] + 1e-5))
           + params["p_beta"])
    psi = jax.nn.sigmoid(psi)
    return x_nchw * psi


if __name__ == "__main__":
    F_g, F_l, F_int = 8, 8, 16
    N, H, W = 2, 16, 16

    key = jax.random.PRNGKey(0)
    k_g, k_x, k_p = jax.random.split(key, 3)
    g = jax.random.normal(k_g, (N, F_g, H, W), jnp.float32)
    x = jax.random.normal(k_x, (N, F_l, H, W), jnp.float32)
    params = init_params(k_p, F_g, F_l, F_int)

    fwd = jax.jit(functools.partial(skip_attention_block, tp=512))
    out = jax.block_until_ready(fwd(g, x, params))

    ref = _reference(g, x, params)
    assert out.shape == (N, F_l, H, W)
    assert jnp.allclose(out, ref, atol=1e-5, rtol=1e-5), "mismatch vs reference"

    # Ragged spatial size exercises the pixel-padding path.
    H2, W2 = 13, 11
    g2 = jax.random.normal(k_g, (N, F_g, H2, W2), jnp.float32)
    x2 = jax.random.normal(k_x, (N, F_l, H2, W2), jnp.float32)
    out2 = jax.block_until_ready(fwd(g2, x2, params))
    ref2 = _reference(g2, x2, params)
    assert out2.shape == (N, F_l, H2, W2)
    assert jnp.allclose(out2, ref2, atol=1e-5, rtol=1e-5), "mismatch (padded)"

    print("KERNEL_OK")
</pallas_src>

<mosaic_0001>
module attributes {stable_mosaic.version = 11 : i64} {
  func.func @_skip_attn_kernel(%arg0: i32, %arg1: i32, %arg2: memref<1x8x256xf32, #tpu.memory_space<vmem>>, %arg3: memref<1x8x256xf32, #tpu.memory_space<vmem>>, %arg4: memref<16x8xf32, #tpu.memory_space<vmem>>, %arg5: memref<16x8xf32, #tpu.memory_space<vmem>>, %arg6: memref<16x1xf32, #tpu.memory_space<vmem>>, %arg7: memref<1x16xf32, #tpu.memory_space<vmem>>, %arg8: memref<1xf32, #tpu.memory_space<smem>>, %arg9: memref<1x8x256xf32, #tpu.memory_space<vmem>>) attributes {dimension_semantics = [#tpu.dimension_semantics<parallel>, #tpu.dimension_semantics<parallel>], iteration_bounds = array<i64: 2, 1>, scalar_prefetch = 0 : i64, scratch_operands = 0 : i64, tpu.core_type = #tpu.core_type<tc>, window_params = [{transform_indices = @transform_0, window_bounds = array<i64: 1, 8, 256>}, {transform_indices = @transform_1, window_bounds = array<i64: 1, 8, 256>}, {pipeline_mode = #tpu.pipeline_mode<synchronous>, transform_indices = @transform_2, window_bounds = array<i64: 16, 8>}, {pipeline_mode = #tpu.pipeline_mode<synchronous>, transform_indices = @transform_3, window_bounds = array<i64: 16, 8>}, {pipeline_mode = #tpu.pipeline_mode<synchronous>, transform_indices = @transform_4, window_bounds = array<i64: 16, 1>}, {pipeline_mode = #tpu.pipeline_mode<synchronous>, transform_indices = @transform_5, window_bounds = array<i64: 1, 16>}, {transform_indices = @transform_6, window_bounds = array<i64: 1>}, {transform_indices = @transform_7, window_bounds = array<i64: 1, 8, 256>}]} {
    %c0 = arith.constant 0 : index
    %c0_0 = arith.constant 0 : index
    %c0_1 = arith.constant 0 : index
    %0 = vector.load %arg2[%c0, %c0_0, %c0_1] : memref<1x8x256xf32, #tpu.memory_space<vmem>>, vector<1x8x256xf32>
    %1 = vector.shape_cast %0 : vector<1x8x256xf32> to vector<8x256xf32>
    %c0_2 = arith.constant 0 : index
    %c0_3 = arith.constant 0 : index
    %c0_4 = arith.constant 0 : index
    %2 = vector.load %arg3[%c0_2, %c0_3, %c0_4] : memref<1x8x256xf32, #tpu.memory_space<vmem>>, vector<1x8x256xf32>
    %3 = vector.shape_cast %2 : vector<1x8x256xf32> to vector<8x256xf32>
    %c0_5 = arith.constant 0 : index
    %c0_6 = arith.constant 0 : index
    %4 = vector.load %arg4[%c0_5, %c0_6] : memref<16x8xf32, #tpu.memory_space<vmem>>, vector<16x8xf32>
    %cst = arith.constant dense<0.000000e+00> : vector<16x256xf32>
    %5 = tpu.matmul %4, %1, %cst {dimension_numbers = #tpu.dot_dimension_numbers<[1], [0], [0], [1], [0, 0, 1, 1], [], []>} : vector<16x8xf32>, vector<8x256xf32>, vector<16x256xf32> -> vector<16x256xf32>
    %c0_7 = arith.constant 0 : index
    %c0_8 = arith.constant 0 : index
    %6 = vector.load %arg5[%c0_7, %c0_8] : memref<16x8xf32, #tpu.memory_space<vmem>>, vector<16x8xf32>
    %cst_9 = arith.constant dense<0.000000e+00> : vector<16x256xf32>
    %7 = tpu.matmul %6, %3, %cst_9 {dimension_numbers = #tpu.dot_dimension_numbers<[1], [0], [0], [1], [0, 0, 1, 1], [], []>} : vector<16x8xf32>, vector<8x256xf32>, vector<16x256xf32> -> vector<16x256xf32>
    %8 = arith.addf %5, %7 : vector<16x256xf32>
    %c0_10 = arith.constant 0 : index
    %c0_11 = arith.constant 0 : index
    %9 = vector.load %arg6[%c0_10, %c0_11] : memref<16x1xf32, #tpu.memory_space<vmem>>, vector<16x1xf32>
    %10 = vector.broadcast %9 : vector<16x1xf32> to vector<16x256xf32>
    %11 = arith.addf %8, %10 : vector<16x256xf32>
    %cst_12 = arith.constant 0.000000e+00 : f32
    %12 = vector.broadcast %cst_12 : f32 to vector<16x256xf32>
    %13 = arith.maximumf %11, %12 : vector<16x256xf32>
    %c0_13 = arith.constant 0 : index
    %c0_14 = arith.constant 0 : index
    %14 = vector.load %arg7[%c0_13, %c0_14] : memref<1x16xf32, #tpu.memory_space<vmem>>, vector<1x16xf32>
    %cst_15 = arith.constant dense<0.000000e+00> : vector<1x256xf32>
    %15 = tpu.matmul %14, %13, %cst_15 {dimension_numbers = #tpu.dot_dimension_numbers<[1], [0], [0], [1], [0, 0, 1, 1], [], []>} : vector<1x16xf32>, vector<16x256xf32>, vector<1x256xf32> -> vector<1x256xf32>
    %c0_16 = arith.constant 0 : index
    %16 = memref.load %arg8[%c0_16] : memref<1xf32, #tpu.memory_space<smem>>
    %17 = vector.broadcast %16 : f32 to vector<1x256xf32>
    %18 = arith.addf %15, %17 : vector<1x256xf32>
    %19 = arith.negf %18 : vector<1x256xf32>
    %20 = math.exp %19 : vector<1x256xf32>
    %cst_17 = arith.constant 1.000000e+00 : f32
    %21 = vector.broadcast %cst_17 : f32 to vector<1x256xf32>
    %22 = arith.addf %21, %20 : vector<1x256xf32>
    %23 = arith.divf %21, %22 : vector<1x256xf32>
    %24 = vector.broadcast %23 : vector<1x256xf32> to vector<8x256xf32>
    %25 = arith.mulf %3, %24 : vector<8x256xf32>
    %c0_18 = arith.constant 0 : index
    %c0_19 = arith.constant 0 : index
    %c0_20 = arith.constant 0 : index
    %26 = vector.load %arg9[%c0_18, %c0_19, %c0_20] : memref<1x8x256xf32, #tpu.memory_space<vmem>>, vector<1x8x256xf32>
    %27 = vector.shape_cast %26 : vector<1x8x256xf32> to vector<8x256xf32>
    %28 = vector.shape_cast %25 : vector<8x256xf32> to vector<1x8x256xf32>
    tpu.vector_store %arg9[%c0_18, %c0_19, %c0_20], %28 {strides = array<i32>} : memref<1x8x256xf32, #tpu.memory_space<vmem>>, vector<1x8x256xf32>,
    return
  }
  func.func @transform_0(%arg0: i32, %arg1: i32) -> (i32, i32, i32) {
    %c0_i32 = arith.constant 0 : i32
    %c0_i32_0 = arith.constant 0 : i32
    return %arg0, %c0_i32, %arg1 : i32, i32, i32
  }
  func.func @transform_1(%arg0: i32, %arg1: i32) -> (i32, i32, i32) {
    %c0_i32 = arith.constant 0 : i32
    %c0_i32_0 = arith.constant 0 : i32
    return %arg0, %c0_i32, %arg1 : i32, i32, i32
  }
  func.func @transform_2(%arg0: i32, %arg1: i32) -> (i32, i32) {
    %c0_i32 = arith.constant 0 : i32
    %c0_i32_0 = arith.constant 0 : i32
    %c0_i32_1 = arith.constant 0 : i32
    return %c0_i32, %c0_i32_0 : i32, i32
  }
  func.func @transform_3(%arg0: i32, %arg1: i32) -> (i32, i32) {
    %c0_i32 = arith.constant 0 : i32
    %c0_i32_0 = arith.constant 0 : i32
    %c0_i32_1 = arith.constant 0 : i32
    return %c0_i32, %c0_i32_0 : i32, i32
  }
  func.func @transform_4(%arg0: i32, %arg1: i32) -> (i32, i32) {
    %c0_i32 = arith.constant 0 : i32
    %c0_i32_0 = arith.constant 0 : i32
    %c0_i32_1 = arith.constant 0 : i32
    return %c0_i32, %c0_i32_0 : i32, i32
  }
  func.func @transform_5(%arg0: i32, %arg1: i32) -> (i32, i32) {
    %c0_i32 = arith.constant 0 : i32
    %c0_i32_0 = arith.constant 0 : i32
    %c0_i32_1 = arith.constant 0 : i32
    return %c0_i32, %c0_i32_0 : i32, i32
  }
  func.func @transform_6(%arg0: i32, %arg1: i32) -> i32 {
    %c0_i32 = arith.constant 0 : i32
    %c0_i32_0 = arith.constant 0 : i32
    return %c0_i32 : i32
  }
  func.func @transform_7(%arg0: i32, %arg1: i32) -> (i32, i32, i32) {
    %c0_i32 = arith.constant 0 : i32
    %c0_i32_0 = arith.constant 0 : i32
    return %arg0, %c0_i32, %arg1 : i32, i32, i32
  }
}

</mosaic_0001>

<llo_original>
// kernel: skip_attention_block.1
$region0: #{skip_attention_block.1}
  #allocation0 [shape = 'u32[]', space=smem, size = 0x4, offset = 0x4, fixed_abs, tag = 'smem constant byte address 0x4 - core index']
  #allocation1 [shape = 'u32[144,128]{1,0:T(1,128)}', space=vmem, size = 0x12000, scoped, tag = 'internal scratch']
  #allocation2 [shape = 'f32[1]{0:T(128)S(6)}', space=smem, size = 0x200, scoped, tag = 'scoped memory for skip_attention_block.1']
  %s0 = inlined_call_operand.vmem [shape: f32[2,8,256], index: 0, kind: input, shape index: {}]
  %s1 = inlined_call_operand.vmem [shape: f32[2,8,256], index: 1, kind: input, shape index: {}]
  %s2 = inlined_call_operand.vmem [shape: f32[16,8], index: 2, kind: input, shape index: {}]
  %s3 = inlined_call_operand.vmem [shape: f32[16,8], index: 3, kind: input, shape index: {}]
  %s4 = inlined_call_operand.vmem [shape: f32[16,1], index: 4, kind: input, shape index: {}]
  %s5 = inlined_call_operand.vmem [shape: f32[1,16], index: 5, kind: input, shape index: {}]
  %s6 = inlined_call_operand.<no memory space> [shape: f32[1], index: 6, kind: input, shape index: {}]
  %s7 = inlined_call_operand.vmem [shape: f32[2,8,256], index: 7, kind: output, shape index: {}]
  %s8 = sld [smem:[#allocation0]]
  $region61: #{skip_attention_block.1} parent=0
    _
  %s10 = ssub.s32 1, %s8
  %s11 = scalar_select 0, %s10, %s8
  %12 = sst [smem:[#allocation2]] %s6
  loop: start=0, step=1, limit=4
  $region2: #{skip_attention_block.1} parent=0 // loop_pre_header
    _
  $region3: #{skip_attention_block.1} parent=0 // loop_header
    %s14 = sphi 0, %s18
    %p15 = scmp.ge.s32.totalorder %s14, 4
    %s21 = sphi 0, %s33
    %s22 = sphi 0, %s29
    %s23 = sphi 0, %s21
    %s24 = sphi 0, %s22
    %s25 = sphi 0, %s23
    %s26 = sphi 0, %s24
    %s38 = sphi 0, %s40
    %s41 = sphi 0, %s38
    %s42 = sphi 0, %s41
    %s58 = sphi 0, %s42
    %s66 = sphi 0, %s68
    %s69 = sphi 0, %s66
    %s70 = sphi 0, %s69
    %s86 = sphi 0, %s70
    %s90 = sphi 0, %s90
    %s92 = sphi 0, %s90
    %s93 = sphi 0, %s92
    %s107 = sphi 0, %s93
    %s111 = sphi 0, %s111
    %s113 = sphi 0, %s111
    %s114 = sphi 0, %s113
    %s128 = sphi 0, %s114
    %s132 = sphi 0, %s132
    %s134 = sphi 0, %s132
    %s135 = sphi 0, %s134
    %s149 = sphi 0, %s135
    %s153 = sphi 0, %s153
    %s155 = sphi 0, %s153
    %s156 = sphi 0, %s155
    %s170 = sphi 0, %s156
    %s174 = sphi 0, %s174
    %s176 = sphi 0, %s174
    %s177 = sphi 0, %s176
    %s191 = sphi 0, %s177
    %s199 = sphi 0, %s201
    %s202 = sphi 0, %s199
    %s203 = sphi 0, %s202
    %s219 = sphi 0, %s203
  $region4: #{skip_attention_block.1} parent=0 // loop_header_branch
    %17 = sbr.rel (%p15) target = $region8
  $region5: #{skip_attention_block.1} parent=0 // loop_body
    %s19 = ssub.s32 %s14, 1
    %s20 = ssub.s32 %s14, 2
    %s27 = sadd.s32 1, %s22
    %p28 = scmp.ge.s32.totalorder %s27, 1
    %s29 = scalar_select %p28, 0, %s27
    %s30 = sadd.s32 1, %s21
    %s31 = scalar_select %p28, %s30, %s21
    %p32 = scmp.ge.s32.totalorder %s31, 2
    %s33 = scalar_select %p32, 0, %s31
    %s34 = ssub.s32 %s21, %s33
    %s35 = ssub.s32 %s22, %s29
    %s36 = sor.u32 %s34, %s35
    %p37 = scmp.eq.s32.totalorder %s36, 0
    %s39 = sadd.s32 %s38, 1
    %s40 = scalar_select %p37, %s38, %s39
    %p43 = pneg %p37
    %p44 = scmp.eq.s32.totalorder %s14, 1
    %p45 = por %p43, %p44
    %p46 = scmp.ne.s32.totalorder %s38, %s41
    %p47 = scmp.eq.s32.totalorder %s14, 0
    %p48 = por %p46, %p47
    %p49 = scmp.ne.s32.totalorder %s38, %s41
    %p50 = scmp.eq.s32.totalorder %s19, 1
    %p51 = por %p49, %p50
    %p52 = scmp.ne.s32.totalorder %s41, %s42
    %p53 = scmp.eq.s32.totalorder %s19, 0
    %p54 = por %p52, %p53
    %p55 = scmp.ne.s32.totalorder %s41, %s42
    %p56 = scmp.eq.s32.totalorder %s20, 1
    %p57 = por %p55, %p56
    %p59 = scmp.ne.s32.totalorder %s42, %s58
    %p60 = scmp.eq.s32.totalorder %s20, 0
    %p61 = por %p59, %p60
    %s62 = ssub.s32 %s21, %s33
    %s63 = ssub.s32 %s22, %s29
    %s64 = sor.u32 %s62, %s63
    %p65 = scmp.eq.s32.totalorder %s64, 0
    %s67 = sadd.s32 %s66, 1
    %s68 = scalar_select %p65, %s66, %s67
    %p71 = pneg %p65
    %p72 = scmp.eq.s32.totalorder %s14, 1
    %p73 = por %p71, %p72
    %p74 = scmp.ne.s32.totalorder %s66, %s69
    %p75 = scmp.eq.s32.totalorder %s14, 0
    %p76 = por %p74, %p75
    %p77 = scmp.ne.s32.totalorder %s66, %s69
    %p78 = scmp.eq.s32.totalorder %s19, 1
    %p79 = por %p77, %p78
    %p80 = scmp.ne.s32.totalorder %s69, %s70
    %p81 = scmp.eq.s32.totalorder %s19, 0
    %p82 = por %p80, %p81
    %p83 = scmp.ne.s32.totalorder %s69, %s70
    %p84 = scmp.eq.s32.totalorder %s20, 1
    %p85 = por %p83, %p84
    %p87 = scmp.ne.s32.totalorder %s70, %s86
    %p88 = scmp.eq.s32.totalorder %s20, 0
    %p89 = por %p87, %p88
    %s91 = sadd.s32 %s90, 1
    %p94 = scmp.eq.s32.totalorder %s14, 1
    %p95 = scmp.ne.s32.totalorder %s90, %s92
    %p96 = scmp.eq.s32.totalorder %s14, 0
    %p97 = por %p95, %p96
    %p98 = scmp.ne.s32.totalorder %s90, %s92
    %p99 = scmp.eq.s32.totalorder %s19, 1
    %p100 = por %p98, %p99
    %p101 = scmp.ne.s32.totalorder %s92, %s93
    %p102 = scmp.eq.s32.totalorder %s19, 0
    %p103 = por %p101, %p102
    %p104 = scmp.ne.s32.totalorder %s92, %s93
    %p105 = scmp.eq.s32.totalorder %s20, 1
    %p106 = por %p104, %p105
    %p108 = scmp.ne.s32.totalorder %s93, %s107
    %p109 = scmp.eq.s32.totalorder %s20, 0
    %p110 = por %p108, %p109
    %s112 = sadd.s32 %s111, 1
    %p115 = scmp.eq.s32.totalorder %s14, 1
    %p116 = scmp.ne.s32.totalorder %s111, %s113
    %p117 = scmp.eq.s32.totalorder %s14, 0
    %p118 = por %p116, %p117
    %p119 = scmp.ne.s32.totalorder %s111, %s113
    %p120 = scmp.eq.s32.totalorder %s19, 1
    %p121 = por %p119, %p120
    %p122 = scmp.ne.s32.totalorder %s113, %s114
    %p123 = scmp.eq.s32.totalorder %s19, 0
    %p124 = por %p122, %p123
    %p125 = scmp.ne.s32.totalorder %s113, %s114
    %p126 = scmp.eq.s32.totalorder %s20, 1
    %p127 = por %p125, %p126
    %p129 = scmp.ne.s32.totalorder %s114, %s128
    %p130 = scmp.eq.s32.totalorder %s20, 0
    %p131 = por %p129, %p130
    %s133 = sadd.s32 %s132, 1
    %p136 = scmp.eq.s32.totalorder %s14, 1
    %p137 = scmp.ne.s32.totalorder %s132, %s134
    %p138 = scmp.eq.s32.totalorder %s14, 0
    %p139 = por %p137, %p138
    %p140 = scmp.ne.s32.totalorder %s132, %s134
    %p141 = scmp.eq.s32.totalorder %s19, 1
    %p142 = por %p140, %p141
    %p143 = scmp.ne.s32.totalorder %s134, %s135
    %p144 = scmp.eq.s32.totalorder %s19, 0
    %p145 = por %p143, %p144
    %p146 = scmp.ne.s32.totalorder %s134, %s135
    %p147 = scmp.eq.s32.totalorder %s20, 1
    %p148 = por %p146, %p147
    %p150 = scmp.ne.s32.totalorder %s135, %s149
    %p151 = scmp.eq.s32.totalorder %s20, 0
    %p152 = por %p150, %p151
    %s154 = sadd.s32 %s153, 1
    %p157 = scmp.eq.s32.totalorder %s14, 1
    %p158 = scmp.ne.s32.totalorder %s153, %s155
    %p159 = scmp.eq.s32.totalorder %s14, 0
    %p160 = por %p158, %p159
    %p161 = scmp.ne.s32.totalorder %s153, %s155
    %p162 = scmp.eq.s32.totalorder %s19, 1
    %p163 = por %p161, %p162
    %p164 = scmp.ne.s32.totalorder %s155, %s156
    %p165 = scmp.eq.s32.totalorder %s19, 0
    %p166 = por %p164, %p165
    %p167 = scmp.ne.s32.totalorder %s155, %s156
    %p168 = scmp.eq.s32.totalorder %s20, 1
    %p169 = por %p167, %p168
    %p171 = scmp.ne.s32.totalorder %s156, %s170
    %p172 = scmp.eq.s32.totalorder %s20, 0
    %p173 = por %p171, %p172
    %s175 = sadd.s32 %s174, 1
    %p178 = scmp.eq.s32.totalorder %s14, 1
    %p179 = scmp.ne.s32.totalorder %s174, %s176
    %p180 = scmp.eq.s32.totalorder %s14, 0
    %p181 = por %p179, %p180
    %p182 = scmp.ne.s32.totalorder %s174, %s176
    %p183 = scmp.eq.s32.totalorder %s19, 1
    %p184 = por %p182, %p183
    %p185 = scmp.ne.s32.totalorder %s176, %s177
    %p186 = scmp.eq.s32.totalorder %s19, 0
    %p187 = por %p185, %p186
    %p188 = scmp.ne.s32.totalorder %s176, %s177
    %p189 = scmp.eq.s32.totalorder %s20, 1
    %p190 = por %p188, %p189
    %p192 = scmp.ne.s32.totalorder %s177, %s191
    %p193 = scmp.eq.s32.totalorder %s20, 0
    %p194 = por %p192, %p193
    %s195 = ssub.s32 %s21, %s33
    %s196 = ssub.s32 %s22, %s29
    %s197 = sor.u32 %s195, %s196
    %p198 = scmp.eq.s32.totalorder %s197, 0
    %s200 = sadd.s32 %s199, 1
    %s201 = scalar_select %p198, %s199, %s200
    %p204 = pneg %p198
    %p205 = scmp.eq.s32.totalorder %s14, 1
    %p206 = por %p204, %p205
    %p207 = scmp.ne.s32.totalorder %s199, %s202
    %p208 = scmp.eq.s32.totalorder %s14, 0
    %p209 = por %p207, %p208
    %p210 = scmp.ne.s32.totalorder %s199, %s202
    %p211 = scmp.eq.s32.totalorder %s19, 1
    %p212 = por %p210, %p211
    %p213 = scmp.ne.s32.totalorder %s202, %s203
    %p214 = scmp.eq.s32.totalorder %s19, 0
    %p215 = por %p213, %p214
    %p216 = scmp.ne.s32.totalorder %s202, %s203
    %p217 = scmp.eq.s32.totalorder %s20, 1
    %p218 = por %p216, %p217
    %p220 = scmp.ne.s32.totalorder %s203, %s219
    %p221 = scmp.eq.s32.totalorder %s20, 0
    %p222 = por %p220, %p221
    %p223 = scmp.le.s32.totalorder 1, %s14
    %p224 = scmp.lt.s32.totalorder %s14, 3
    %p225 = pnand %p223, %p224
    %p226 = pneg %p225
    // Predicated region
    $region9: #{skip_attention_block.1} parent=5 // pred_check
      _
    $region10: #{skip_attention_block.1} parent=5 // pred_check_branch
      %228 = sbr.rel (%p225) target = $region12
    $region11: #{skip_attention_block.1} parent=5 // pred_region
      %s229 = ssub.s32 %s14, 1
      // Predicated region
      $region13: #{skip_attention_block.1} parent=11 // pred_check
        %p230 = pneg %p103
      $region14: #{skip_attention_block.1} parent=11 // pred_check_branch
        %232 = sbr.rel (%p230) target = $region16
      $region15: #{skip_attention_block.1} parent=11 // pred_region
        _
      $region16: #{skip_attention_block.1} parent=11 // pred_fallthru
        _
      // Predicated region
      $region17: #{skip_attention_block.1} parent=11 // pred_check
        %p233 = pneg %p124
      $region18: #{skip_attention_block.1} parent=11 // pred_check_branch
        %235 = sbr.rel (%p233) target = $region20
      $region19: #{skip_attention_block.1} parent=11 // pred_region
        _
      $region20: #{skip_attention_block.1} parent=11 // pred_fallthru
        _
      // Predicated region
      $region21: #{skip_attention_block.1} parent=11 // pred_check
        %p236 = pneg %p145
      $region22: #{skip_attention_block.1} parent=11 // pred_check_branch
        %238 = sbr.rel (%p236) target = $region24
      $region23: #{skip_attention_block.1} parent=11 // pred_region
        _
      $region24: #{skip_attention_block.1} parent=11 // pred_fallthru
        _
      // Predicated region
      $region25: #{skip_attention_block.1} parent=11 // pred_check
        %p239 = pneg %p166
      $region26: #{skip_attention_block.1} parent=11 // pred_check_branch
        %241 = sbr.rel (%p239) target = $region28
      $region27: #{skip_attention_block.1} parent=11 // pred_region
        _
      $region28: #{skip_attention_block.1} parent=11 // pred_fallthru
        _
      // Predicated region
      $region29: #{skip_attention_block.1} parent=11 // pred_check
        %p242 = pneg %p187
      $region30: #{skip_attention_block.1} parent=11 // pred_check_branch
        %244 = sbr.rel (%p242) target = $region32
      $region31: #{skip_attention_block.1} parent=11 // pred_region
        _
      $region32: #{skip_attention_block.1} parent=11 // pred_fallthru
        _
    $region12: #{skip_attention_block.1} parent=5 // pred_fallthru
      _
    %p245 = scmp.lt.s32.totalorder %s14, 2
    // Predicated region
    $region33: #{skip_attention_block.1} parent=5 // pred_check
      %p246 = pneg %p245
    $region34: #{skip_attention_block.1} parent=5 // pred_check_branch
      %248 = sbr.rel (%p246) target = $region36
    $region35: #{skip_attention_block.1} parent=5 // pred_region
      // Predicated region
      $region37: #{skip_attention_block.1} parent=35 // pred_check
        %p249 = pneg %p48
      $region38: #{skip_attention_block.1} parent=35 // pred_check_branch
        %251 = sbr.rel (%p249) target = $region40
      $region39: #{skip_attention_block.1} parent=35 // pred_region
        %s252 = smul.u32 2, %s22
        %p253 = scmp.lt.s32.totalorder %s21, 1
        %s254 = scalar_select %p253, %s21, 1
        %p255 = scmp.lt.s32.totalorder %s252, 1
        %s256 = scalar_select %p255, %s252, 1
        %s257 = smul.addr %s254, 2
        %s258 = sadd.s32 %s256, %s257
        %s259 = smul.addr %s258, 8
        %s260 = scalar_lea.vmem %s0, %s259
        %s261 = smul.u32 2, %s22
      $region40: #{skip_attention_block.1} parent=35 // pred_fallthru
        _
      // Predicated region
      $region41: #{skip_attention_block.1} parent=35 // pred_check
        %p262 = pneg %p76
      $region42: #{skip_attention_block.1} parent=35 // pred_check_branch
        %264 = sbr.rel (%p262) target = $region44
      $region43: #{skip_attention_block.1} parent=35 // pred_region
        %s265 = smul.u32 2, %s22
        %p266 = scmp.lt.s32.totalorder %s21, 1
        %s267 = scalar_select %p266, %s21, 1
        %p268 = scmp.lt.s32.totalorder %s265, 1
        %s269 = scalar_select %p268, %s265, 1
        %s270 = smul.addr %s267, 2
        %s271 = sadd.s32 %s269, %s270
        %s272 = smul.addr %s271, 8
        %s273 = scalar_lea.vmem %s1, %s272
        %s274 = smul.u32 2, %s22
      $region44: #{skip_attention_block.1} parent=35 // pred_fallthru
        _
    $region36: #{skip_attention_block.1} parent=5 // pred_fallthru
      _
    %p275 = scmp.le.s32.totalorder 1, %s14
    %p276 = scmp.lt.s32.totalorder %s14, 3
    %p277 = pnand %p275, %p276
    %p278 = pneg %p277
    // Predicated region
    $region45: #{skip_attention_block.1} parent=5 // pred_check
      _
    $region46: #{skip_attention_block.1} parent=5 // pred_check_branch
      %280 = sbr.rel (%p277) target = $region48
    $region47: #{skip_attention_block.1} parent=5 // pred_region
      %s281 = ssub.s32 %s14, 1
      %s282 = smul.u32 2, %s24
      %p283 = scmp.lt.s32.totalorder %s23, 1
      %s284 = scalar_select %p283, %s23, 1
      %p285 = scmp.lt.s32.totalorder %s282, 1
      %s286 = scalar_select %p285, %s282, 1
      %s287 = smul.addr %s284, 2
      %s288 = sadd.s32 %s286, %s287
      %s289 = smul.addr %s288, 8
      %s290 = scalar_lea.vmem %s0, %s289
      %p291 = pneg %p54
      %p292 = pneg %p51
      %s293 = smul.u32 2, %s24
      %p294 = scmp.lt.s32.totalorder %s23, 1
      %s295 = scalar_select %p294, %s23, 1
      %p296 = scmp.lt.s32.totalorder %s293, 1
      %s297 = scalar_select %p296, %s293, 1
      %s298 = smul.addr %s295, 2
      %s299 = sadd.s32 %s297, %s298
      %s300 = smul.addr %s299, 8
      %s301 = scalar_lea.vmem %s1, %s300
      %p302 = pneg %p82
      %p303 = pneg %p79
      %p304 = pneg %p103
      %p305 = pneg %p100
      %p306 = pneg %p124
      %p307 = pneg %p121
      %p308 = pneg %p145
      %p309 = pneg %p142
      %p310 = pneg %p166
      %p311 = pneg %p163
      %p312 = pneg %p187
      %p313 = pneg %p184
      %p314 = pneg %p215
      %p315 = pneg %p212
      %s316 = smul.u32 2, %s24
      %p317 = scmp.lt.s32.totalorder %s23, 1
      %s318 = scalar_select %p317, %s23, 1
      %p319 = scmp.lt.s32.totalorder %s316, 1
      %s320 = scalar_select %p319, %s316, 1
      %s321 = smul.addr %s318, 2
      %s322 = sadd.s32 %s320, %s321
      %s323 = smul.addr %s322, 8
      %s324 = scalar_lea.vmem %s7, %s323
      %s325 = smul.u32 2, %s24
      %p326 = scmp.lt.s32.totalorder %s23, 1
      %s327 = scalar_select %p326, %s23, 1
      %p328 = scmp.lt.s32.totalorder %s325, 1
      %s329 = scalar_select %p328, %s325, 1
      %s330 = smul.addr %s327, 2
      %s331 = sadd.s32 %s329, %s330
      %s332 = smul.addr %s331, 8
      %s333 = scalar_lea.vmem %s0, %s332
      %s334 = smul.u32 2, %s24
      %s335 = smul.u32 2, %s24
      %p336 = scmp.lt.s32.totalorder %s23, 1
      %s337 = scalar_select %p336, %s23, 1
      %p338 = scmp.lt.s32.totalorder %s335, 1
      %s339 = scalar_select %p338, %s335, 1
      %s340 = smul.addr %s337, 2
      %s341 = sadd.s32 %s339, %s340
      %s342 = smul.addr %s341, 8
      %s343 = scalar_lea.vmem %s1, %s342
      %s344 = smul.u32 2, %s24
      %s345 = smul.u32 2, %s24
      %p346 = scmp.lt.s32.totalorder %s23, 1
      %s347 = scalar_select %p346, %s23, 1
      %p348 = scmp.lt.s32.totalorder %s345, 1
      %s349 = scalar_select %p348, %s345, 1
      %s350 = smul.addr %s347, 2
      %s351 = sadd.s32 %s349, %s350
      %s352 = smul.addr %s351, 8
      %s353 = scalar_lea.vmem %s7, %s352
      %s354 = smul.u32 2, %s24
      %v355 = vld [vmem:[%s333] sm:$0xff]
      %v356 = vld [vmem:[%s333 + $0x8] sm:$0xff]
      %v357 = vld [vmem:[%s343] sm:$0xff]
      %v358 = vld [vmem:[%s343 + $0x8] sm:$0xff]
      %v359 = vld [vmem:[%s2] sm:$0xff]
      %v360 = vld [vmem:[%s2 + $0x8] sm:$0xff]
      %v361 = vld [vmem:[%s3] sm:$0xff]
      %v362 = vld [vmem:[%s3 + $0x8] sm:$0xff]
      %vm363 = vcmask 64512
      %v365 = vsel %vm363, %v361, 0
      %v368 = vsel %vm363, %v362, 0
      %370 = vmatprep.subr.mxu0 0.0
      %371 = vmatpush1.msra.mxu0 0.0
      %372 = vmatprep.subr.mxu0 0.0
      %373 = vmatpush1.msra.mxu0 0.0
      %374 = vmatprep.subr.mxu0 0.0
      %375 = vmatpush1.msra.mxu0 0.0
      %376 = vmatprep.subr.mxu0 0.0
      %377 = vmatpush1.msra.mxu0 0.0
      %378 = vmatprep.subr.mxu0 0.0
      %379 = vmatpush1.msra.mxu0 0.0
      %380 = vmatprep.subr.mxu0 0.0
      %381 = vmatpush1.msra.mxu0 0.0
      %382 = vmatprep.subr.mxu0 0.0
      %383 = vmatpush1.msra.mxu0 0.0
      %384 = vmatprep.subr.mxu0 0.0
      %385 = vmatpush1.msra.mxu0 0.0
      %386 = vmatprep.subr.mxu0 0.0
      %387 = vmatpush1.msra.mxu0 0.0
      %388 = vmatprep.subr.mxu0 0.0
      %389 = vmatpush1.msra.mxu0 0.0
      %390 = vmatprep.subr.mxu0 0.0
      %391 = vmatpush1.msra.mxu0 0.0
      %392 = vmatprep.subr.mxu0 0.0
      %393 = vmatpush1.msra.mxu0 0.0
      %394 = vmatprep.subr.mxu0 0.0
      %395 = vmatpush1.msra.mxu0 0.0
      %396 = vmatprep.subr.mxu0 0.0
      %397 = vmatpush1.msra.mxu0 0.0
      %398 = vmatprep.subr.mxu0 0.0
      %399 = vmatpush1.msra.mxu0 0.0
      %400 = vmatprep.subr.mxu0 %v358
      %401 = vmatpush1.msra.mxu0 %v357
      %402 = vmatprep.subr.mxu0 0.0
      %403 = vmatpush2.msra.mxu0 0.0
      %404 = vmatprep.subr.mxu0 0.0
      %405 = vmatpush2.msra.mxu0 0.0
      %406 = vmatprep.subr.mxu0 0.0
      %407 = vmatpush2.msra.mxu0 0.0
      %408 = vmatprep.subr.mxu0 0.0
      %409 = vmatpush2.msra.mxu0 0.0
      %410 = vmatprep.subr.mxu0 0.0
      %411 = vmatpush2.msra.mxu0 0.0
      %412 = vmatprep.subr.mxu0 0.0
      %413 = vmatpush2.msra.mxu0 0.0
      %414 = vmatprep.subr.mxu0 0.0
      %415 = vmatpush2.msra.mxu0 0.0
      %416 = vmatprep.subr.mxu0 0.0
      %417 = vmatpush2.msra.mxu0 0.0
      %418 = vmatprep.subr.mxu0 0.0
      %419 = vmatpush2.msra.mxu0 0.0
      %420 = vmatprep.subr.mxu0 0.0
      %421 = vmatpush2.msra.mxu0 0.0
      %422 = vmatprep.subr.mxu0 0.0
      %423 = vmatpush2.msra.mxu0 0.0
      %424 = vmatprep.subr.mxu0 0.0
      %425 = vmatpush2.msra.mxu0 0.0
      %426 = vmatprep.subr.mxu0 0.0
      %427 = vmatpush2.msra.mxu0 0.0
      %428 = vmatprep.subr.mxu0 0.0
      %429 = vmatpush2.msra.mxu0 0.0
      %430 = vmatprep.subr.mxu0 0.0
      %431 = vmatpush2.msra.mxu0 0.0
      %432 = vmatprep.subr.mxu0 0.0
      %433 = vmatpush2.msra.mxu0 0.0
      %434 = vmatprep.mubr.f32.mxu0 0.0
      %435 = vmatmul.mubr.f32.gmra.mxu0 %v365
      %v436 = vpop.f32.mrf.mxu0
      %v437 = vadd.f32 0.0, %v436
      %v438 = vpop.f32.mrf.mxu0
      %v439 = vadd.f32 0.0, %v438
      %440 = vmatprep.mubr.f32.mxu0 0.0
      %441 = vmatmul.mubr.f32.gmra.mxu0 %v368
      %v442 = vpop.f32.mrf.mxu0
      %v443 = vadd.f32 0.0, %v442
      %v444 = vpop.f32.mrf.mxu0
      %v445 = vadd.f32 0.0, %v444
      %446 = vdwg.mxu0
      %v448 = vsel %vm363, %v359, 0
      %v451 = vsel %vm363, %v360, 0
      %453 = vmatprep.subr.mxu0 0.0
      %454 = vmatpush1.msra.mxu0 0.0
      %455 = vmatprep.subr.mxu0 0.0
      %456 = vmatpush1.msra.mxu0 0.0
      %457 = vmatprep.subr.mxu0 0.0
      %458 = vmatpush1.msra.mxu0 0.0
      %459 = vmatprep.subr.mxu0 0.0
      %460 = vmatpush1.msra.mxu0 0.0
      %461 = vmatprep.subr.mxu0 0.0
      %462 = vmatpush1.msra.mxu0 0.0
      %463 = vmatprep.subr.mxu0 0.0
      %464 = vmatpush1.msra.mxu0 0.0
      %465 = vmatprep.subr.mxu0 0.0
      %466 = vmatpush1.msra.mxu0 0.0
      %467 = vmatprep.subr.mxu0 0.0
      %468 = vmatpush1.msra.mxu0 0.0
      %469 = vmatprep.subr.mxu0 0.0
      %470 = vmatpush1.msra.mxu0 0.0
      %471 = vmatprep.subr.mxu0 0.0
      %472 = vmatpush1.msra.mxu0 0.0
      %473 = vmatprep.subr.mxu0 0.0
      %474 = vmatpush1.msra.mxu0 0.0
      %475 = vmatprep.subr.mxu0 0.0
      %476 = vmatpush1.msra.mxu0 0.0
      %477 = vmatprep.subr.mxu0 0.0
      %478 = vmatpush1.msra.mxu0 0.0
      %479 = vmatprep.subr.mxu0 0.0
      %480 = vmatpush1.msra.mxu0 0.0
      %481 = vmatprep.subr.mxu0 0.0
      %482 = vmatpush1.msra.mxu0 0.0
      %483 = vmatprep.subr.mxu0 %v356
      %484 = vmatpush1.msra.mxu0 %v355
      %485 = vmatprep.subr.mxu0 0.0
      %486 = vmatpush2.msra.mxu0 0.0
      %487 = vmatprep.subr.mxu0 0.0
      %488 = vmatpush2.msra.mxu0 0.0
      %489 = vmatprep.subr.mxu0 0.0
      %490 = vmatpush2.msra.mxu0 0.0
      %491 = vmatprep.subr.mxu0 0.0
      %492 = vmatpush2.msra.mxu0 0.0
      %493 = vmatprep.subr.mxu0 0.0
      %494 = vmatpush2.msra.mxu0 0.0
      %495 = vmatprep.subr.mxu0 0.0
      %496 = vmatpush2.msra.mxu0 0.0
      %497 = vmatprep.subr.mxu0 0.0
      %498 = vmatpush2.msra.mxu0 0.0
      %499 = vmatprep.subr.mxu0 0.0
      %500 = vmatpush2.msra.mxu0 0.0
      %501 = vmatprep.subr.mxu0 0.0
      %502 = vmatpush2.msra.mxu0 0.0
      %503 = vmatprep.subr.mxu0 0.0
      %504 = vmatpush2.msra.mxu0 0.0
      %505 = vmatprep.subr.mxu0 0.0
      %506 = vmatpush2.msra.mxu0 0.0
      %507 = vmatprep.subr.mxu0 0.0
      %508 = vmatpush2.msra.mxu0 0.0
      %509 = vmatprep.subr.mxu0 0.0
      %510 = vmatpush2.msra.mxu0 0.0
      %511 = vmatprep.subr.mxu0 0.0
      %512 = vmatpush2.msra.mxu0 0.0
      %513 = vmatprep.subr.mxu0 0.0
      %514 = vmatpush2.msra.mxu0 0.0
      %515 = vmatprep.subr.mxu0 0.0
      %516 = vmatpush2.msra.mxu0 0.0
      %517 = vmatprep.mubr.f32.mxu0 0.0
      %518 = vmatmul.mubr.f32.gmra.mxu0 %v448
      %v519 = vpop.f32.mrf.mxu0
      %v520 = vadd.f32 %v437, %v519
      %v521 = vpop.f32.mrf.mxu0
      %v522 = vadd.f32 %v439, %v521
      %523 = vmatprep.mubr.f32.mxu0 0.0
      %524 = vmatmul.mubr.f32.gmra.mxu0 %v451
      %v525 = vpop.f32.mrf.mxu0
      %v526 = vadd.f32 %v443, %v525
      %v527 = vpop.f32.mrf.mxu0
      %v528 = vadd.f32 %v445, %v527
      %529 = vdwg.mxu0
      %v530 = vld [vmem:[%s4] sm:$0xff]
      %v531 = vld [vmem:[%s4 + $0x8] sm:$0xff]
      %533 = vset.pattern.permute.xlu0 0
      %534 = vperm.xlu0 %533, %v530
      %v535 = vpop.permute.xlu0 %534
      %538 = vset.pattern.permute.xlu0 0
      %539 = vperm.xlu0 %538, %v531
      %v540 = vpop.permute.xlu0 %539
      %v542 = vadd.f32 %v520, %v535
      %v543 = vadd.f32 %v522, %v535
      %v544 = vadd.f32 %v526, %v540
      %v545 = vadd.f32 %v528, %v540
      %v546 = vmax.f32 %v542, 0.0
      %v547 = vmax.f32 %v543, 0.0
      %v548 = vmax.f32 %v544, 0.0
      %v549 = vmax.f32 %v545, 0.0
      %v550 = vld [vmem:[%s5] sm:$0x1]
      %s551 = sld [smem:[#allocation2]]
      %v552 = vstv %s551
      %vm553 = vcmask 130048
      %v555 = vsel %vm553, %v550, 0
      %557 = vmatprep.subr.mxu0 0.0
      %558 = vmatpush1.msra.mxu0 0.0
      %559 = vmatprep.subr.mxu0 0.0
      %560 = vmatpush1.msra.mxu0 0.0
      %561 = vmatprep.subr.mxu0 0.0
      %562 = vmatpush1.msra.mxu0 0.0
      %563 = vmatprep.subr.mxu0 0.0
      %564 = vmatpush1.msra.mxu0 0.0
      %565 = vmatprep.subr.mxu0 0.0
      %566 = vmatpush1.msra.mxu0 0.0
      %567 = vmatprep.subr.mxu0 0.0
      %568 = vmatpush1.msra.mxu0 0.0
      %569 = vmatprep.subr.mxu0 0.0
      %570 = vmatpush1.msra.mxu0 0.0
      %571 = vmatprep.subr.mxu0 0.0
      %572 = vmatpush1.msra.mxu0 0.0
      %573 = vmatprep.subr.mxu0 0.0
      %574 = vmatpush1.msra.mxu0 0.0
      %575 = vmatprep.subr.mxu0 0.0
      %576 = vmatpush1.msra.mxu0 0.0
      %577 = vmatprep.subr.mxu0 0.0
      %578 = vmatpush1.msra.mxu0 0.0
      %579 = vmatprep.subr.mxu0 0.0
      %580 = vmatpush1.msra.mxu0 0.0
      %581 = vmatprep.subr.mxu0 0.0
      %582 = vmatpush1.msra.mxu0 0.0
      %583 = vmatprep.subr.mxu0 0.0
      %584 = vmatpush1.msra.mxu0 0.0
      %585 = vmatprep.subr.mxu0 %v549
      %586 = vmatpush1.msra.mxu0 %v548
      %587 = vmatprep.subr.mxu0 %v547
      %588 = vmatpush1.msra.mxu0 %v546
      %589 = vmatprep.subr.mxu0 0.0
      %590 = vmatpush2.msra.mxu0 0.0
      %591 = vmatprep.subr.mxu0 0.0
      %592 = vmatpush2.msra.mxu0 0.0
      %593 = vmatprep.subr.mxu0 0.0
      %594 = vmatpush2.msra.mxu0 0.0
      %595 = vmatprep.subr.mxu0 0.0
      %596 = vmatpush2.msra.mxu0 0.0
      %597 = vmatprep.subr.mxu0 0.0
      %598 = vmatpush2.msra.mxu0 0.0
      %599 = vmatprep.subr.mxu0 0.0
      %600 = vmatpush2.msra.mxu0 0.0
      %601 = vmatprep.subr.mxu0 0.0
      %602 = vmatpush2.msra.mxu0 0.0
      %603 = vmatprep.subr.mxu0 0.0
      %604 = vmatpush2.msra.mxu0 0.0
      %605 = vmatprep.subr.mxu0 0.0
      %606 = vmatpush2.msra.mxu0 0.0
      %607 = vmatprep.subr.mxu0 0.0
      %608 = vmatpush2.msra.mxu0 0.0
      %609 = vmatprep.subr.mxu0 0.0
      %610 = vmatpush2.msra.mxu0 0.0
      %611 = vmatprep.subr.mxu0 0.0
      %612 = vmatpush2.msra.mxu0 0.0
      %613 = vmatprep.subr.mxu0 0.0
      %614 = vmatpush2.msra.mxu0 0.0
      %615 = vmatprep.subr.mxu0 0.0
      %616 = vmatpush2.msra.mxu0 0.0
      %617 = vmatprep.subr.mxu0 0.0
      %618 = vmatpush2.msra.mxu0 0.0
      %619 = vmatprep.subr.mxu0 0.0
      %620 = vmatpush2.msra.mxu0 0.0
      %621 = vmatprep.mubr.f32.mxu0 0.0
      %622 = vmatmul.mubr.f32.gmra.mxu0 %v555
      %v623 = vpop.f32.mrf.mxu0
      %v624 = vadd.f32 %v552, %v623
      %v625 = vpop.f32.mrf.mxu0
      %v626 = vadd.f32 %v552, %v625
      %627 = vdwg.mxu0
      %v628 = vxor.u32 %v624, 2147483648
      %v629 = vxor.u32 %v626, 2147483648
      %v630 = vmul.f32 %v628, 1.442695
      %v631 = vpow.pop %v630
      %v632 = vmul.f32 %v629, 1.442695
      %v633 = vpow.pop %v632
      %v634 = vadd.f32 %v631, 1.0
      %v635 = vadd.f32 %v633, 1.0
      %v636 = vrcp.pop %v634
      %v637 = vmul.f32 1.0, %v636
      %v638 = vrcp.pop %v635
      %v639 = vmul.f32 1.0, %v638
      %v640 = vlaneseq
      %v641 = vshrl.u32 %v640, 7
      %v642 = vsub.s32 0, %v641
      %v643 = vrot.slane %v637, %v642
      %v644 = vlaneseq
      %v645 = vshrl.u32 %v644, 7
      %v646 = vsub.s32 0, %v645
      %v647 = vrot.slane %v639, %v646
      %v648 = vmul.f32 %v357, %v643
      %v649 = vmul.f32 %v358, %v647
      %650 = vst [vmem:[%s353] sm:$0xff] %v648
      %651 = vst [vmem:[%s353 + $0x8] sm:$0xff] %v649
      %s652 = smul.u32 2, %s24
      %p653 = scmp.lt.s32.totalorder %s23, 1
      %s654 = scalar_select %p653, %s23, 1
      %p655 = scmp.lt.s32.totalorder %s652, 1
      %s656 = scalar_select %p655, %s652, 1
      %s657 = smul.addr %s654, 2
      %s658 = sadd.s32 %s656, %s657
      %s659 = smul.addr %s658, 8
      %s660 = scalar_lea.vmem %s7, %s659
      // Predicated region
      $region49: #{skip_attention_block.1} parent=47 // pred_check
        %p661 = pneg %p212
      $region50: #{skip_attention_block.1} parent=47 // pred_check_branch
        %663 = sbr.rel (%p661) target = $region52
      $region51: #{skip_attention_block.1} parent=47 // pred_region
        %s664 = smul.u32 2, %s24
      $region52: #{skip_attention_block.1} parent=47 // pred_fallthru
        _
    $region48: #{skip_attention_block.1} parent=5 // pred_fallthru
      _
    %p665 = scmp.le.s32.totalorder 2, %s14
    // Predicated region
    $region53: #{skip_attention_block.1} parent=5 // pred_check
      %p666 = pneg %p665
    $region54: #{skip_attention_block.1} parent=5 // pred_check_branch
      %668 = sbr.rel (%p666) target = $region56
    $region55: #{skip_attention_block.1} parent=5 // pred_region
      %s669 = ssub.s32 %s14, 2
      // Predicated region
      $region57: #{skip_attention_block.1} parent=55 // pred_check
        %p670 = pneg %p218
      $region58: #{skip_attention_block.1} parent=55 // pred_check_branch
        %672 = sbr.rel (%p670) target = $region60
      $region59: #{skip_attention_block.1} parent=55 // pred_region
        %s673 = smul.u32 2, %s26
        %p674 = scmp.lt.s32.totalorder %s25, 1
        %s675 = scalar_select %p674, %s25, 1
        %p676 = scmp.lt.s32.totalorder %s673, 1
        %s677 = scalar_select %p676, %s673, 1
        %s678 = smul.addr %s675, 2
        %s679 = sadd.s32 %s677, %s678
        %s680 = smul.addr %s679, 8
        %s681 = scalar_lea.vmem %s7, %s680
      $region60: #{skip_attention_block.1} parent=55 // pred_fallthru
        _
    $region56: #{skip_attention_block.1} parent=5 // pred_fallthru
      _
  $region6: #{skip_attention_block.1} parent=0 // loop_footer
    %s18 = sadd.s32 1, %s14
  $region7: #{skip_attention_block.1} parent=0 // loop_footer_branch
    %13 = sbr.rel target = $region3
  $region8: #{skip_attention_block.1} parent=0 // loop_exit
    _

</llo_original>
